<compile_context>
chip_gen: v7x
topology: tpu7x:2x2x1
jax: 0.10.0
libtpu: 0.0.40
codegen_flags: <defaults>
</compile_context>

<pallas_src>
import jax
import jax.numpy as jnp
from jax import lax
from jax.experimental import pallas as pl
from jax.experimental.pallas import tpu as pltpu


# ---------------------------------------------------------------------------
# Hardware / sizing helpers
# ---------------------------------------------------------------------------
def _cdiv(a, b):
    return -(-a // b)


def _vmem_capacity_bytes():
    """Per-TensorCore VMEM capacity; conservative (v7x-class) fallback."""
    try:
        info = pltpu.get_tpu_info()
        cap = getattr(info, "vmem_capacity_bytes", None)
        if cap:
            return int(cap)
    except Exception:
        pass
    return 64 * 1024 * 1024


def _choose_tiles(b, d):
    """Pick a (tb, td) block of roughly 2 MiB of f32.

    tb is a multiple of 8 or the full batch dim; td is a multiple of 128 or the
    full feature dim (both exempt from the (8,128) rule when full).
    """
    target = (2 * 1024 * 1024) // 4          # ~2 MiB of f32 per block (elements)
    max_rows = 256                           # keeps the in-kernel fold unroll short
    if d * 8 <= target:
        # Narrow rows: keep full rows, tile the batch dim.
        td = d
        tb_cap = min(max_rows, max(8, target // max(d, 1)))
        tb = b if b <= tb_cap else (tb_cap // 8) * 8
    else:
        # Wide rows: tile the lane dim too (at most 8 rows per block).
        tb = b if b <= 8 else 8
        td_cap = max(128, (target // tb // 128) * 128)
        td = d if d <= td_cap else td_cap
    return tb, td


# ---------------------------------------------------------------------------
# Fused single-block kernel (small / medium inputs): min/max + scale in one pass.
# ---------------------------------------------------------------------------
def _fused_kernel(x_ref, o_ref):
    x = x_ref[...].astype(jnp.float32)       # upcast on the VPU (no wrapper astype)
    mn = jnp.min(x)
    mx = jnp.max(x)
    inv = 255.0 / (mx - mn)                  # one exact scalar divide
    o_ref[...] = ((x - mn) * inv).astype(o_ref.dtype)


# ---------------------------------------------------------------------------
# Fused two-phase tiled kernel (large inputs): grid = (2, nbr, nbc).
#   phase 0: running min/max into a fixed-shape VMEM accumulator, finalize to SMEM
#   phase 1: scale with the SMEM scalars
# ---------------------------------------------------------------------------
def _make_tiled_kernel(rows, cols, tb, td, acc_rows, ragged_rows, ragged_cols):
    groups = tb // acc_rows                  # exact by construction

    def kernel(x_ref, o_ref, vmin_acc, vmax_acc, stats_sm):
        phase = pl.program_id(0)
        i = pl.program_id(1)
        j = pl.program_id(2)
        nbr = pl.num_programs(1)
        nbc = pl.num_programs(2)

        # ------------------ phase 0: global min / max ----------------------
        @pl.when(phase == 0)
        def _():
            x = x_ref[...].astype(jnp.float32)
            if ragged_rows or ragged_cols:
                mask = None
                if ragged_rows:
                    mask = (lax.broadcasted_iota(jnp.int32, (tb, td), 0)
                            < (rows - i * tb))
                if ragged_cols:
                    cm = (lax.broadcasted_iota(jnp.int32, (tb, td), 1)
                          < (cols - j * td))
                    mask = cm if mask is None else (mask & cm)
                x_min = jnp.where(mask, x, jnp.inf)
                x_max = jnp.where(mask, x, -jnp.inf)
            else:
                x_min = x
                x_max = x

            # Fold the (tb, td) tile into a fixed (acc_rows, td) partial (pure VPU).
            pmin = x_min[0:acc_rows, :]
            pmax = x_max[0:acc_rows, :]
            for g in range(1, groups):
                pmin = jnp.minimum(pmin, x_min[g * acc_rows:(g + 1) * acc_rows, :])
                pmax = jnp.maximum(pmax, x_max[g * acc_rows:(g + 1) * acc_rows, :])

            @pl.when((i == 0) & (j == 0))
            def _():
                vmin_acc[...] = pmin
                vmax_acc[...] = pmax

            @pl.when((i > 0) | (j > 0))
            def _():
                vmin_acc[...] = jnp.minimum(vmin_acc[...], pmin)
                vmax_acc[...] = jnp.maximum(vmax_acc[...], pmax)

            # Single XLU reduce + SMEM scalar write + ONE scalar divide, once.
            @pl.when((i == nbr - 1) & (j == nbc - 1))
            def _():
                gmin = jnp.min(vmin_acc[...])
                gmax = jnp.max(vmax_acc[...])
                stats_sm[0] = gmin
                stats_sm[1] = 255.0 / (gmax - gmin)

        # ------------------ phase 1: scale ---------------------------------
        @pl.when(phase == 1)
        def _():
            mn = stats_sm[0]
            inv = stats_sm[1]
            o_ref[...] = ((x_ref[...].astype(jnp.float32) - mn) * inv).astype(o_ref.dtype)

    return kernel


# ---------------------------------------------------------------------------
# Wrapper (Generator.forward, batch_norm=False)
# ---------------------------------------------------------------------------
def generator_forward(x, *, channels=1, height=36, width=64,
                      fused_payload_cap=None, tiles=None):
    """Pallas version of Generator.forward (batch_norm=False).

    `fused_payload_cap` / `tiles` are test/tuning knobs (None = auto).
    """
    b = x.shape[0]
    d = channels * height * width
    x2d = x.reshape(b, d)                    # metadata-only collapse, no HBM copy
    out_dtype = x.dtype if jnp.issubdtype(x.dtype, jnp.floating) else jnp.float32

    payload_f32 = b * d * 4
    vmem_cap = _vmem_capacity_bytes()
    fused_vmem_limit = (vmem_cap * 7) // 8   # 112 MiB on v5e/v6e, 56 MiB on v7x
    cap = fused_vmem_limit // 3 if fused_payload_cap is None else fused_payload_cap

    if payload_f32 <= cap:
        # ---- fused single-launch path: whole tensor resident in VMEM -------
        vmem_limit = int(min(fused_vmem_limit,
                             max(32 * 1024 * 1024, 4 * payload_f32)))
        y2d = pl.pallas_call(
            _fused_kernel,
            out_shape=jax.ShapeDtypeStruct((b, d), out_dtype),
            compiler_params=pltpu.CompilerParams(vmem_limit_bytes=vmem_limit),
        )(x2d)
    else:
        # ---- single-call two-phase tiled path -------------------------------
        tb, td = _choose_tiles(b, d) if tiles is None else tiles
        nbr = _cdiv(b, tb)
        nbc = _cdiv(d, td)
        ragged_rows = (b % tb) != 0
        ragged_cols = (d % td) != 0
        acc_rows = 8 if (tb % 8 == 0) else tb

        kernel = _make_tiled_kernel(b, d, tb, td, acc_rows, ragged_rows, ragged_cols)
        tiled_vmem_limit = int(min(32 * 1024 * 1024, fused_vmem_limit))

        y2d = pl.pallas_call(
            kernel,
            out_shape=jax.ShapeDtypeStruct((b, d), out_dtype),
            grid_spec=pltpu.PrefetchScalarGridSpec(
                num_scalar_prefetch=0,
                grid=(2, nbr, nbc),
                in_specs=[
                    pl.BlockSpec((tb, td), lambda p, i, j: (i, j)),
                ],
                # phase 0: park on block (0,0) (never written -> never flushed);
                # phase 1: lane-dense (i, j) output blocks.
                out_specs=pl.BlockSpec((tb, td), lambda p, i, j: (i * p, j * p)),
                scratch_shapes=[
                    pltpu.VMEM((acc_rows, td), jnp.float32),   # running min
                    pltpu.VMEM((acc_rows, td), jnp.float32),   # running max
                    pltpu.SMEM((2,), jnp.float32),             # [mn, 255/(mx-mn)]
                ],
            ),
            compiler_params=pltpu.CompilerParams(
                dimension_semantics=("arbitrary", "arbitrary", "arbitrary"),
                vmem_limit_bytes=tiled_vmem_limit,
            ),
        )(x2d)

    # glue: NCHW output exactly as the PyTorch module returns (metadata-only)
    return y2d.reshape(b, channels, height, width)


if __name__ == "__main__":
    # Small, deterministic input consistent with output_shape=(B, 1, 36, 64),
    # i.e. the flat output of a preceding linear stack: (B, C*H*W).
    B, C, H, W = 2, 1, 36, 64
    key = jax.random.PRNGKey(0)
    x = jax.random.normal(key, (B, C * H * W), dtype=jnp.float32)

    out = generator_forward(x, channels=C, height=H, width=W)
    out = jax.block_until_ready(out)

    xr = x.reshape(B, C, H, W)
    ref = (xr - xr.min()) / (xr.max() - xr.min()) * 255.0
    assert out.shape == (B, C, H, W)
    assert jnp.allclose(out, ref, rtol=1e-5, atol=1e-4), "fused path mismatch"

    # Also exercise the tiled fallback (forced), including ragged row & col masking.
    B2 = 10
    x2 = jax.random.normal(jax.random.PRNGKey(1), (B2, C * H * W), dtype=jnp.float32)
    out2 = generator_forward(x2, channels=C, height=H, width=W,
                             fused_payload_cap=0, tiles=(8, 512))
    out2 = jax.block_until_ready(out2)
    xr2 = x2.reshape(B2, C, H, W)
    ref2 = (xr2 - xr2.min()) / (xr2.max() - xr2.min()) * 255.0
    assert jnp.allclose(out2, ref2, rtol=1e-5, atol=1e-4), "tiled path mismatch"

    print("KERNEL_OK")
</pallas_src>

<mosaic_0001>
module attributes {stable_mosaic.version = 11 : i64} {
  func.func @_fused_kernel(%arg0: memref<2x2304xf32, #tpu.memory_space<vmem>>, %arg1: memref<2x2304xf32, #tpu.memory_space<vmem>>) attributes {dimension_semantics = [], scalar_prefetch = 0 : i64, scratch_operands = 0 : i64, tpu.core_type = #tpu.core_type<tc>} {
    %c0 = arith.constant 0 : index
    %c0_0 = arith.constant 0 : index
    %0 = vector.load %arg0[%c0, %c0_0] : memref<2x2304xf32, #tpu.memory_space<vmem>>, vector<2x2304xf32>
    %1 = vector.shape_cast %0 : vector<2x2304xf32> to vector<1x2x2304xf32>
    %cst = arith.constant dense<0x7F800000> : vector<1xf32>
    %2 = vector.multi_reduction <minimumf>, %1, %cst [1, 2] : vector<1x2x2304xf32> to vector<1xf32>
    %3 = vector.shape_cast %2 : vector<1xf32> to vector<1x1x1xf32>
    %4 = vector.extract %3[0, 0, 0] : f32 from vector<1x1x1xf32>
    %5 = vector.shape_cast %0 : vector<2x2304xf32> to vector<1x2x2304xf32>
    %cst_1 = arith.constant dense<0xFF800000> : vector<1xf32>
    %6 = vector.multi_reduction <maximumf>, %5, %cst_1 [1, 2] : vector<1x2x2304xf32> to vector<1xf32>
    %7 = vector.shape_cast %6 : vector<1xf32> to vector<1x1x1xf32>
    %8 = vector.extract %7[0, 0, 0] : f32 from vector<1x1x1xf32>
    %9 = arith.subf %8, %4 : f32
    %cst_2 = arith.constant 2.550000e+02 : f32
    %10 = arith.divf %cst_2, %9 : f32
    %11 = vector.broadcast %4 : f32 to vector<2x2304xf32>
    %12 = arith.subf %0, %11 : vector<2x2304xf32>
    %13 = vector.broadcast %10 : f32 to vector<2x2304xf32>
    %14 = arith.mulf %12, %13 : vector<2x2304xf32>
    %c0_3 = arith.constant 0 : index
    %c0_4 = arith.constant 0 : index
    %15 = vector.load %arg1[%c0_3, %c0_4] : memref<2x2304xf32, #tpu.memory_space<vmem>>, vector<2x2304xf32>
    tpu.vector_store %arg1[%c0_3, %c0_4], %14 {strides = array<i32>} : memref<2x2304xf32, #tpu.memory_space<vmem>>, vector<2x2304xf32>,
    return
  }
}

</mosaic_0001>

<llo_original>
// kernel: tpu_custom_call.1
$region0: #{tpu_custom_call.1}
  #allocation0 [shape = 'u32[]', space=smem, size = 0x4, offset = 0x4, fixed_abs, tag = 'smem constant byte address 0x4 - core index']
  #allocation1 [shape = 'u32[144,128]{1,0:T(1,128)}', space=vmem, size = 0x12000, scoped, tag = 'internal scratch']
  %s0 = inlined_call_operand.hbm [shape: f32[2,2304], index: 0, kind: input, shape index: {}]
  %s1 = inlined_call_operand.hbm [shape: f32[2,2304], index: 1, kind: output, shape index: {}]
  %s2 = sld [smem:[#allocation0]]
  $region18: #{tpu_custom_call.1} parent=0
    _
  %s4 = ssub.s32 1, %s2
  %s5 = scalar_select 0, %s4, %s2
  $region1: #{tpu_custom_call.1} parent=0
    #allocation2 [shape = 'u8[18432]{0}', space=vmem, size = 0x4800, scoped, tag = 'input window, operand 0, single buffered']
    #allocation3 [shape = 's32[1]{0}', space=sflag, size = 0x4, scoped, tag = 'scoped memory for tpu_custom_call.1']
    #allocation4 [shape = 's32[1]{0}', space=sflag, size = 0x4, scoped, tag = 'scoped memory for tpu_custom_call.1']
    #allocation5 [shape = 'u8[18432]{0}', space=vmem, size = 0x4800, scoped, tag = 'output window, operand 0, single buffered']
    %6 = vsyncpa [#allocation3], 0
    %7 = vsyncpa [#allocation4], 0
    // Predicated region
    $region2: #{tpu_custom_call.1} parent=1 // pred_check
      _
    $region3: #{tpu_custom_call.1} parent=1 // pred_check_branch
      %9 = sbr.rel (0) target = $region5
    $region4: #{tpu_custom_call.1} parent=1 // pred_region
      %s11 = ssub.s32 576, 576
      %12 = vsyncadd [#allocation3], %s11
      %s14 = sshll.u32 [#allocation2], 4
      %s15 = int_to_ptr.vmem [resolvable:$true] %s14
      %17 = dma.hbm_to_vmem [thread:$0]  %s0, 576, %s15, [#allocation3]
    $region5: #{tpu_custom_call.1} parent=1 // pred_fallthru
      _
    // Predicated region
    $region6: #{tpu_custom_call.1} parent=1 // pred_check
      _
    $region7: #{tpu_custom_call.1} parent=1 // pred_check_branch
      %19 = sbr.rel (0) target = $region9
    $region8: #{tpu_custom_call.1} parent=1 // pred_region
      %20 = dma.done [#allocation3], 576
    $region9: #{tpu_custom_call.1} parent=1 // pred_fallthru
      _
    %v21 = vld [vmem:[#allocation2] sm:$0xff]
    %v22 = vld [vmem:[#allocation2 + $0x8] sm:$0xff]
    %v23 = vld [vmem:[#allocation2 + $0x10] sm:$0xff]
    %v24 = vld [vmem:[#allocation2 + $0x18] sm:$0xff]
    %v25 = vld [vmem:[#allocation2 + $0x20] sm:$0xf]
    %v31 = vcombine.high %v21, %v21
    %v33 = vunpack.c.l.s4 1983009808
    %v34 = vunpack.c.0.s8 %v33
    %v35 = vlaneseq
    %v36 = vshrl.u32 %v35, 7
    %v37 = vsub.s32 %v34, %v36
    %v38 = vrot.slane %v21, %v37
    %v40 = vunpack.c.l.s4 1983009808
    %v41 = vunpack.c.0.s8 %v40
    %v42 = vlaneseq
    %v43 = vshrl.u32 %v42, 7
    %v44 = vsub.s32 %v41, %v43
    %v45 = vrot.slane %v31, %v44
    %v46 = vcombine.high %v38, %v38
    %v47 = vcombine.high %v45, %v45
    %v48 = vcombine.high %v22, %v22
    %v50 = vunpack.c.l.s4 1983009808
    %v51 = vunpack.c.0.s8 %v50
    %v52 = vlaneseq
    %v53 = vshrl.u32 %v52, 7
    %v54 = vsub.s32 %v51, %v53
    %v55 = vrot.slane %v22, %v54
    %v57 = vunpack.c.l.s4 1983009808
    %v58 = vunpack.c.0.s8 %v57
    %v59 = vlaneseq
    %v60 = vshrl.u32 %v59, 7
    %v61 = vsub.s32 %v58, %v60
    %v62 = vrot.slane %v48, %v61
    %v63 = vcombine.high %v55, %v55
    %v64 = vcombine.high %v62, %v62
    %v65 = vcombine.high %v23, %v23
    %v67 = vunpack.c.l.s4 1983009808
    %v68 = vunpack.c.0.s8 %v67
    %v69 = vlaneseq
    %v70 = vshrl.u32 %v69, 7
    %v71 = vsub.s32 %v68, %v70
    %v72 = vrot.slane %v23, %v71
    %v74 = vunpack.c.l.s4 1983009808
    %v75 = vunpack.c.0.s8 %v74
    %v76 = vlaneseq
    %v77 = vshrl.u32 %v76, 7
    %v78 = vsub.s32 %v75, %v77
    %v79 = vrot.slane %v65, %v78
    %v80 = vcombine.high %v72, %v72
    %v81 = vcombine.high %v79, %v79
    %v82 = vcombine.high %v24, %v24
    %v84 = vunpack.c.l.s4 1983009808
    %v85 = vunpack.c.0.s8 %v84
    %v86 = vlaneseq
    %v87 = vshrl.u32 %v86, 7
    %v88 = vsub.s32 %v85, %v87
    %v89 = vrot.slane %v24, %v88
    %v91 = vunpack.c.l.s4 1983009808
    %v92 = vunpack.c.0.s8 %v91
    %v93 = vlaneseq
    %v94 = vshrl.u32 %v93, 7
    %v95 = vsub.s32 %v92, %v94
    %v96 = vrot.slane %v82, %v95
    %v97 = vcombine.high %v89, %v89
    %v98 = vcombine.high %v96, %v96
    %v100 = vunpack.c.l.s4 1983009808
    %v101 = vunpack.c.0.s8 %v100
    %v102 = vlaneseq
    %v103 = vshrl.u32 %v102, 7
    %v104 = vsub.s32 %v101, %v103
    %v105 = vrot.slane %v25, %v104
    %v106 = vcombine.high %v105, %v105
    %vm125 = vcmask 1041408
    %v126 = vsel %vm125, %v38, inf
    %v127 = vsel %vm125, %v46, inf
    %v128 = vsel %vm125, %v45, inf
    %v129 = vsel %vm125, %v47, inf
    %v130 = vsel %vm125, %v55, inf
    %v131 = vmin.f32 %v126, %v130
    %v132 = vsel %vm125, %v63, inf
    %v133 = vmin.f32 %v127, %v132
    %v134 = vsel %vm125, %v62, inf
    %v135 = vmin.f32 %v128, %v134
    %v136 = vsel %vm125, %v64, inf
    %v137 = vmin.f32 %v129, %v136
    %v138 = vsel %vm125, %v72, inf
    %v139 = vmin.f32 %v131, %v138
    %v140 = vsel %vm125, %v80, inf
    %v141 = vmin.f32 %v133, %v140
    %v142 = vsel %vm125, %v79, inf
    %v143 = vmin.f32 %v135, %v142
    %v144 = vsel %vm125, %v81, inf
    %v145 = vmin.f32 %v137, %v144
    %v146 = vsel %vm125, %v89, inf
    %v147 = vmin.f32 %v139, %v146
    %v148 = vsel %vm125, %v97, inf
    %v149 = vmin.f32 %v141, %v148
    %v150 = vsel %vm125, %v96, inf
    %v151 = vmin.f32 %v143, %v150
    %v152 = vsel %vm125, %v98, inf
    %v153 = vmin.f32 %v145, %v152
    %v154 = vsel %vm125, %v105, inf
    %v155 = vmin.f32 %v147, %v154
    %v156 = vsel %vm125, %v106, inf
    %v157 = vmin.f32 %v149, %v156
    %v158 = vmin.f32 %v155, %v157
    %v159 = vmin.f32 %v151, %v153
    %v160 = vmin.f32 %v158, %v159
    %161 = vmin.xlane.f32.xlu0 %v160
    %v162 = vpop.xlane.xlu0 %161
    %v163 = vrot.slane %v162, 4
    %v164 = vmin.f32 %v162, %v163
    %v165 = vrot.slane %v164, 2
    %v166 = vmin.f32 %v164, %v165
    %v167 = vrot.slane %v166, 1
    %v168 = vmin.f32 %v166, %v167
    %s169 = vtos %v168
    %v170 = vsel %vm125, %v38, -inf
    %v171 = vsel %vm125, %v46, -inf
    %v172 = vsel %vm125, %v45, -inf
    %v173 = vsel %vm125, %v47, -inf
    %v174 = vsel %vm125, %v55, -inf
    %v175 = vmax.f32 %v170, %v174
    %v176 = vsel %vm125, %v63, -inf
    %v177 = vmax.f32 %v171, %v176
    %v178 = vsel %vm125, %v62, -inf
    %v179 = vmax.f32 %v172, %v178
    %v180 = vsel %vm125, %v64, -inf
    %v181 = vmax.f32 %v173, %v180
    %v182 = vsel %vm125, %v72, -inf
    %v183 = vmax.f32 %v175, %v182
    %v184 = vsel %vm125, %v80, -inf
    %v185 = vmax.f32 %v177, %v184
    %v186 = vsel %vm125, %v79, -inf
    %v187 = vmax.f32 %v179, %v186
    %v188 = vsel %vm125, %v81, -inf
    %v189 = vmax.f32 %v181, %v188
    %v190 = vsel %vm125, %v89, -inf
    %v191 = vmax.f32 %v183, %v190
    %v192 = vsel %vm125, %v97, -inf
    %v193 = vmax.f32 %v185, %v192
    %v194 = vsel %vm125, %v96, -inf
    %v195 = vmax.f32 %v187, %v194
    %v196 = vsel %vm125, %v98, -inf
    %v197 = vmax.f32 %v189, %v196
    %v198 = vsel %vm125, %v105, -inf
    %v199 = vmax.f32 %v191, %v198
    %v200 = vsel %vm125, %v106, -inf
    %v201 = vmax.f32 %v193, %v200
    %v202 = vmax.f32 %v199, %v201
    %v203 = vmax.f32 %v195, %v197
    %v204 = vmax.f32 %v202, %v203
    %205 = vmax.xlane.f32.xlu0 %v204
    %v206 = vpop.xlane.xlu0 %205
    %v207 = vrot.slane %v206, 4
    %v208 = vmax.f32 %v206, %v207
    %v209 = vrot.slane %v208, 2
    %v210 = vmax.f32 %v208, %v209
    %v211 = vrot.slane %v210, 1
    %v212 = vmax.f32 %v210, %v211
    %s213 = vtos %v212
    %s214 = ssub.f32 %s213, %s169
    %v215 = vstv %s214
    %v216 = vrcp.pop %v215
    %s217 = vtos %v216
    %s218 = smul.f32 255.0, %s217
    %v219 = vstv %s169
    %v220 = vsub.f32 %v21, %v219
    %v221 = vsub.f32 %v22, %v219
    %v222 = vsub.f32 %v23, %v219
    %v223 = vsub.f32 %v24, %v219
    %v224 = vsub.f32 %v25, %v219
    %v225 = vstv %s218
    %v226 = vmul.f32 %v220, %v225
    %v227 = vmul.f32 %v221, %v225
    %v228 = vmul.f32 %v222, %v225
    %v229 = vmul.f32 %v223, %v225
    %v230 = vmul.f32 %v224, %v225
    %231 = vst [vmem:[#allocation5] sm:$0xff] %v226
    %232 = vst [vmem:[#allocation5 + $0x8] sm:$0xff] %v227
    %233 = vst [vmem:[#allocation5 + $0x10] sm:$0xff] %v228
    %234 = vst [vmem:[#allocation5 + $0x18] sm:$0xff] %v229
    %235 = vst [vmem:[#allocation5 + $0x20] sm:$0xf] %v230
    // Predicated region
    $region10: #{tpu_custom_call.1} parent=1 // pred_check
      _
    $region11: #{tpu_custom_call.1} parent=1 // pred_check_branch
      %237 = sbr.rel (0) target = $region13
    $region12: #{tpu_custom_call.1} parent=1 // pred_region
      %s239 = ssub.s32 576, 576
      %240 = vsyncadd [#allocation4], %s239
      %s242 = sshll.u32 [#allocation5], 4
      %s243 = int_to_ptr.vmem [resolvable:$true] %s242
      %245 = dma.vmem_to_hbm [thread:$0]  %s243, 576, %s1, [#allocation4]
    $region13: #{tpu_custom_call.1} parent=1 // pred_fallthru
      _
    // Predicated region
    $region14: #{tpu_custom_call.1} parent=1 // pred_check
      _
    $region15: #{tpu_custom_call.1} parent=1 // pred_check_branch
      %247 = sbr.rel (0) target = $region17
    $region16: #{tpu_custom_call.1} parent=1 // pred_region
      %248 = dma.done [#allocation4], 576
    $region17: #{tpu_custom_call.1} parent=1 // pred_fallthru
      _
    %249 = vsyncpa [#allocation3], 1
    %250 = vsyncpa [#allocation4], 1

</llo_original>
